<compile_context>
chip_gen: v7x
topology: tpu7x:2x2x1
jax: 0.10.0
libtpu: 0.0.40
codegen_flags: <defaults>
</compile_context>

<pallas_src>
import functools

import jax
import jax.numpy as jnp
from jax.experimental import pallas as pl
from jax.experimental.pallas import tpu as pltpu

_LANES = 128
_SUBLANES = 8


def _cdiv(a, b):
    return -(-a // b)


def _ln_row_kernel(x_ref, w_ref, b_ref, o_ref, *, inv_n):
    """Plain per-row LayerNorm: the full lane width is one normalization group."""
    x = x_ref[...].astype(jnp.float32)
    s1 = jnp.sum(x, axis=-1, keepdims=True)
    s2 = jnp.sum(x * x, axis=-1, keepdims=True)
    mu = s1 * inv_n
    var = jnp.maximum(s2 * inv_n - mu * mu, 0.0)   # unbiased=False; clamp cancellation
    inv = jax.lax.rsqrt(var + 1e-5)
    o_ref[...] = ((x - mu) * (inv * w_ref[...]) + b_ref[...]).astype(o_ref.dtype)


def _ln_seg_kernel(x_ref, w_ref, b_ref, seg_ref, o_ref, *, inv_n):
    """Segmented LayerNorm: each lane row holds L//C independent C-wide groups.

    seg_ref is a resident (L, L) block-diagonal ones matrix (built once in the
    wrapper); x @ seg_mat does the segmented reduction AND the broadcast back to
    every lane of the segment in one MXU op, keeping all loads/stores lane-dense.
    """
    x = x_ref[...].astype(jnp.float32)
    seg_mat = seg_ref[...]
    s1 = jnp.dot(x, seg_mat, preferred_element_type=jnp.float32)
    s2 = jnp.dot(x * x, seg_mat, preferred_element_type=jnp.float32)
    mu = s1 * inv_n
    var = jnp.maximum(s2 * inv_n - mu * mu, 0.0)
    inv = jax.lax.rsqrt(var + 1e-5)
    o_ref[...] = ((x - mu) * (inv * w_ref[...]) + b_ref[...]).astype(o_ref.dtype)


def withbias_layernorm(x, weight, bias, *, target_block_bytes=2 << 20,
                       min_grid_blocks=2):
    """x: (..., C) with C == weight.shape[0]. Returns same shape/dtype as x."""
    orig_shape = x.shape
    C = orig_shape[-1]
    assert weight.shape == (C,) and bias.shape == (C,)

    x2d = x.reshape(-1, C)
    rows = x2d.shape[0]
    if rows == 0:
        return x

    # Lane-dense repacking: fold G consecutive rows into one 128-lane row when C
    # divides 128. If rows is not a multiple of G, pad with up to G-1 rows (a
    # small copy) rather than falling back to L=C and masked partial stores.
    if C < _LANES and _LANES % C == 0:
        G = _LANES // C
    else:
        G = 1

    pad_rows = (-rows) % G
    if pad_rows:
        x2d = jnp.concatenate(
            [x2d, jnp.zeros((pad_rows, C), dtype=x2d.dtype)], axis=0)
    rows_padded = rows + pad_rows
    L = G * C
    rows_p = rows_padded // G
    x2d = x2d.reshape(rows_p, L)

    w32 = weight.astype(jnp.float32)
    b32 = bias.astype(jnp.float32)
    if G > 1:
        w32 = jnp.tile(w32, (G,))
        b32 = jnp.tile(b32, (G,))
    w_row = w32.reshape(1, L)
    b_row = b32.reshape(1, L)

    # Row-tile size: ~target_block_bytes per block, sized from max(itemsize, 4)
    # bytes/elem so f32 in-kernel temporaries (bf16/fp16 inputs) stay inside the
    # VMEM budget on v7x (64 MiB physical). Sublane (8) aligned; cap tr so the
    # grid has at least `min_grid_blocks` blocks (v7x megacore sharding).
    eff_itemsize = max(jnp.dtype(x2d.dtype).itemsize, 4)
    tr = max(_SUBLANES, int(target_block_bytes) // (L * eff_itemsize))
    tr = min(tr, _SUBLANES * _cdiv(rows_p, _SUBLANES * max(1, min_grid_blocks)))
    if tr >= rows_p:
        tr = rows_p                                  # single block = full array
    else:
        tr = max(_SUBLANES, (tr // _SUBLANES) * _SUBLANES)
    grid = (_cdiv(rows_p, tr),)                      # tail block is masked by Pallas

    io_itemsize = jnp.dtype(x2d.dtype).itemsize
    n_elems = rows_p * L
    cost = pl.CostEstimate(
        flops=8 * n_elems,                           # sums + normalize + affine (advisory)
        transcendentals=n_elems,                     # rsqrt
        bytes_accessed=2 * n_elems * io_itemsize + 2 * L * 4,
    )

    x_spec = pl.BlockSpec((tr, L), lambda i: (i, 0))
    wb_spec = pl.BlockSpec((1, L), lambda i: (0, 0))      # resident weight/bias
    out_spec = pl.BlockSpec((tr, L), lambda i: (i, 0))

    if G > 1:
        # Block-diagonal ones matrix, built once (resident f32 input, ~64 KiB).
        seg_id = jnp.arange(L, dtype=jnp.int32) // C
        seg_mat = (seg_id[:, None] == seg_id[None, :]).astype(jnp.float32)
        kernel = functools.partial(_ln_seg_kernel, inv_n=1.0 / C)
        in_specs = [x_spec, wb_spec, wb_spec,
                    pl.BlockSpec((L, L), lambda i: (0, 0))]  # resident seg_mat
        args = (x2d, w_row, b_row, seg_mat)
    else:
        kernel = functools.partial(_ln_row_kernel, inv_n=1.0 / C)
        in_specs = [x_spec, wb_spec, wb_spec]
        args = (x2d, w_row, b_row)

    out = pl.pallas_call(
        kernel,
        out_shape=jax.ShapeDtypeStruct((rows_p, L), x.dtype),
        grid_spec=pltpu.PrefetchScalarGridSpec(
            num_scalar_prefetch=0,
            grid=grid,
            in_specs=in_specs,
            out_specs=out_spec,
        ),
        compiler_params=pltpu.CompilerParams(
            dimension_semantics=("parallel",),
            vmem_limit_bytes=64 * 1024 * 1024,
        ),
        cost_estimate=cost,
    )(*args)

    out = out.reshape(rows_padded, C)
    if pad_rows:
        out = out[:rows]
    return out.reshape(orig_shape)


if __name__ == "__main__":
    key = jax.random.PRNGKey(0)
    k1, k2, k3, k4, k5 = jax.random.split(key, 5)

    def ref_ln(x, w, b):
        mu = jnp.mean(x, axis=-1, keepdims=True)
        var = jnp.mean((x - mu) ** 2, axis=-1, keepdims=True)
        return (x - mu) / jnp.sqrt(var + 1e-5) * w + b

    # ---- Test 1: module config (C=32, fresh params ones/zeros), packed path,
    #      rows_p=128 -> >=2 grid blocks (v7x both-TC path exercised) ----
    C = 32
    B, H, W = 2, 16, 16
    weight = jnp.ones((C,), dtype=jnp.float32)   # torch.ones(normalized_shape)
    bias = jnp.zeros((C,), dtype=jnp.float32)    # torch.zeros(normalized_shape)
    x = jax.random.normal(k1, (B, H * W, C), dtype=jnp.float32)  # "b c h w -> b (h w) c"
    out = jax.block_until_ready(withbias_layernorm(x, weight, bias))
    assert out.shape == x.shape and out.dtype == x.dtype
    assert jnp.allclose(out, ref_ln(x, weight, bias), atol=1e-4, rtol=1e-4)

    # ---- Test 2: non-trivial affine, rows % G != 0 -> padded lane-dense path
    #      (rows=74, G=4 -> pad 2 rows -> 19 packed rows, masked tail block) ----
    w2 = jax.random.normal(k2, (C,), dtype=jnp.float32)
    b2 = jax.random.normal(k3, (C,), dtype=jnp.float32)
    x2 = jax.random.normal(k4, (2, 37, C), dtype=jnp.float32)
    out2 = jax.block_until_ready(withbias_layernorm(x2, w2, b2))
    assert jnp.allclose(out2, ref_ln(x2, w2, b2), atol=1e-4, rtol=1e-4)

    # ---- Test 3: fallback row-wise path (C >= 128), small tiles, masked tail ----
    C3 = 256
    w3 = jnp.ones((C3,), dtype=jnp.float32)
    b3 = jnp.zeros((C3,), dtype=jnp.float32)
    x3 = jax.random.normal(k5, (3, 7, C3), dtype=jnp.float32)   # 21 rows
    out3 = jax.block_until_ready(
        withbias_layernorm(x3, w3, b3, target_block_bytes=8192)  # tr=8, grid=3
    )
    assert jnp.allclose(out3, ref_ln(x3, w3, b3), atol=1e-4, rtol=1e-4)

    print("KERNEL_OK")
</pallas_src>

<mosaic_0001>
module attributes {stable_mosaic.version = 11 : i64} {
  func.func @_ln_seg_kernel(%arg0: i32, %arg1: memref<64x128xf32, #tpu.memory_space<vmem>>, %arg2: memref<1x128xf32, #tpu.memory_space<vmem>>, %arg3: memref<1x128xf32, #tpu.memory_space<vmem>>, %arg4: memref<128x128xf32, #tpu.memory_space<vmem>>, %arg5: memref<64x128xf32, #tpu.memory_space<vmem>>) attributes {dimension_semantics = [#tpu.dimension_semantics<parallel>], iteration_bounds = array<i64: 2>, scalar_prefetch = 0 : i64, scratch_operands = 0 : i64, tpu.core_type = #tpu.core_type<tc>, window_params = [{transform_indices = @transform_0, window_bounds = array<i64: 64, 128>}, {pipeline_mode = #tpu.pipeline_mode<synchronous>, transform_indices = @transform_1, window_bounds = array<i64: 1, 128>}, {pipeline_mode = #tpu.pipeline_mode<synchronous>, transform_indices = @transform_2, window_bounds = array<i64: 1, 128>}, {pipeline_mode = #tpu.pipeline_mode<synchronous>, transform_indices = @transform_3, window_bounds = array<i64: 128, 128>}, {transform_indices = @transform_4, window_bounds = array<i64: 64, 128>}]} {
    %c0 = arith.constant 0 : index
    %c0_0 = arith.constant 0 : index
    %0 = vector.load %arg1[%c0, %c0_0] : memref<64x128xf32, #tpu.memory_space<vmem>>, vector<64x128xf32>
    %c0_1 = arith.constant 0 : index
    %c0_2 = arith.constant 0 : index
    %1 = vector.load %arg4[%c0_1, %c0_2] : memref<128x128xf32, #tpu.memory_space<vmem>>, vector<128x128xf32>
    %cst = arith.constant dense<0.000000e+00> : vector<64x128xf32>
    %2 = tpu.matmul %0, %1, %cst {dimension_numbers = #tpu.dot_dimension_numbers<[1], [0], [0], [1], [0, 0, 1, 1], [], []>} : vector<64x128xf32>, vector<128x128xf32>, vector<64x128xf32> -> vector<64x128xf32>
    %3 = arith.mulf %0, %0 : vector<64x128xf32>
    %cst_3 = arith.constant dense<0.000000e+00> : vector<64x128xf32>
    %4 = tpu.matmul %3, %1, %cst_3 {dimension_numbers = #tpu.dot_dimension_numbers<[1], [0], [0], [1], [0, 0, 1, 1], [], []>} : vector<64x128xf32>, vector<128x128xf32>, vector<64x128xf32> -> vector<64x128xf32>
    %cst_4 = arith.constant 3.125000e-02 : f32
    %5 = vector.broadcast %cst_4 : f32 to vector<64x128xf32>
    %6 = arith.mulf %2, %5 : vector<64x128xf32>
    %cst_5 = arith.constant 3.125000e-02 : f32
    %7 = vector.broadcast %cst_5 : f32 to vector<64x128xf32>
    %8 = arith.mulf %4, %7 : vector<64x128xf32>
    %9 = arith.mulf %6, %6 : vector<64x128xf32>
    %10 = arith.subf %8, %9 : vector<64x128xf32>
    %cst_6 = arith.constant 0.000000e+00 : f32
    %11 = vector.broadcast %cst_6 : f32 to vector<64x128xf32>
    %12 = arith.maximumf %10, %11 : vector<64x128xf32>
    %cst_7 = arith.constant 9.99999974E-6 : f32
    %13 = vector.broadcast %cst_7 : f32 to vector<64x128xf32>
    %14 = arith.addf %12, %13 : vector<64x128xf32>
    %15 = math.rsqrt %14 : vector<64x128xf32>
    %16 = arith.subf %0, %6 : vector<64x128xf32>
    %c0_8 = arith.constant 0 : index
    %c0_9 = arith.constant 0 : index
    %17 = vector.load %arg2[%c0_8, %c0_9] : memref<1x128xf32, #tpu.memory_space<vmem>>, vector<1x128xf32>
    %18 = vector.broadcast %17 : vector<1x128xf32> to vector<64x128xf32>
    %19 = arith.mulf %15, %18 : vector<64x128xf32>
    %20 = arith.mulf %16, %19 : vector<64x128xf32>
    %c0_10 = arith.constant 0 : index
    %c0_11 = arith.constant 0 : index
    %21 = vector.load %arg3[%c0_10, %c0_11] : memref<1x128xf32, #tpu.memory_space<vmem>>, vector<1x128xf32>
    %22 = vector.broadcast %21 : vector<1x128xf32> to vector<64x128xf32>
    %23 = arith.addf %20, %22 : vector<64x128xf32>
    %c0_12 = arith.constant 0 : index
    %c0_13 = arith.constant 0 : index
    %24 = vector.load %arg5[%c0_12, %c0_13] : memref<64x128xf32, #tpu.memory_space<vmem>>, vector<64x128xf32>
    tpu.vector_store %arg5[%c0_12, %c0_13], %23 {strides = array<i32>} : memref<64x128xf32, #tpu.memory_space<vmem>>, vector<64x128xf32>,
    return
  }
  func.func @transform_0(%arg0: i32) -> (i32, i32) {
    %c0_i32 = arith.constant 0 : i32
    %c0_i32_0 = arith.constant 0 : i32
    return %arg0, %c0_i32 : i32, i32
  }
  func.func @transform_1(%arg0: i32) -> (i32, i32) {
    %c0_i32 = arith.constant 0 : i32
    %c0_i32_0 = arith.constant 0 : i32
    %c0_i32_1 = arith.constant 0 : i32
    return %c0_i32, %c0_i32_0 : i32, i32
  }
  func.func @transform_2(%arg0: i32) -> (i32, i32) {
    %c0_i32 = arith.constant 0 : i32
    %c0_i32_0 = arith.constant 0 : i32
    %c0_i32_1 = arith.constant 0 : i32
    return %c0_i32, %c0_i32_0 : i32, i32
  }
  func.func @transform_3(%arg0: i32) -> (i32, i32) {
    %c0_i32 = arith.constant 0 : i32
    %c0_i32_0 = arith.constant 0 : i32
    %c0_i32_1 = arith.constant 0 : i32
    return %c0_i32, %c0_i32_0 : i32, i32
  }
  func.func @transform_4(%arg0: i32) -> (i32, i32) {
    %c0_i32 = arith.constant 0 : i32
    %c0_i32_0 = arith.constant 0 : i32
    return %arg0, %c0_i32 : i32, i32
  }
}

</mosaic_0001>

<llo_original>
// kernel: tpu_custom_call.1
$region0: #{tpu_custom_call.1}
  #allocation0 [shape = 'u32[]', space=smem, size = 0x4, offset = 0x4, fixed_abs, tag = 'smem constant byte address 0x4 - core index']
  #allocation1 [shape = 'u32[144,128]{1,0:T(1,128)}', space=vmem, size = 0x12000, scoped, tag = 'internal scratch']
  %s0 = inlined_call_operand.hbm [shape: f32[128,128], index: 0, kind: input, shape index: {}]
  %s1 = inlined_call_operand.hbm [shape: f32[1,128], index: 1, kind: input, shape index: {}]
  %s2 = inlined_call_operand.hbm [shape: f32[1,128], index: 2, kind: input, shape index: {}]
  %s3 = inlined_call_operand.hbm [shape: f32[128,128], index: 3, kind: input, shape index: {}]
  %s4 = inlined_call_operand.hbm [shape: f32[128,128], index: 4, kind: output, shape index: {}]
  %s5 = sld [smem:[#allocation0]]
  $region65: #{tpu_custom_call.1} parent=0
    _
  %s7 = ssub.s32 1, %s5
  %s8 = scalar_select 0, %s7, %s5
  $region1: #{tpu_custom_call.1} parent=0
    #allocation2 [shape = 'u8[65536]{0}', space=vmem, size = 0x10000, scoped, tag = 'input window, operand 0']
    #allocation3 [shape = 's32[2]{0}', space=sflag, size = 0x8, scoped, tag = 'scoped memory for tpu_custom_call.1']
    #allocation4 [shape = 's32[2]{0}', space=sflag, size = 0x8, scoped, tag = 'scoped memory for tpu_custom_call.1']
    #allocation5 [shape = 'u8[512]{0}', space=vmem, size = 0x400, scoped, tag = 'input window, operand 1, single buffered']
    #allocation6 [shape = 's32[1]{0}', space=sflag, size = 0x4, scoped, tag = 'scoped memory for tpu_custom_call.1']
    #allocation7 [shape = 'u8[512]{0}', space=vmem, size = 0x400, scoped, tag = 'input window, operand 2, single buffered']
    #allocation8 [shape = 'u8[65536]{0}', space=vmem, size = 0x10000, scoped, tag = 'input window, operand 3, single buffered']
    #allocation9 [shape = 's32[1]{0}', space=sflag, size = 0x4, scoped, tag = 'scoped memory for tpu_custom_call.1']
    #allocation10 [shape = 'u8[65536]{0}', space=vmem, size = 0x10000, scoped, tag = 'output window, operand 0']
    %9 = vsyncpa [#allocation3], 0
    %s10 = scalar_lea.sflag [#allocation3], 1
    %11 = vsyncpa %s10, 0
    %12 = vsyncpa [#allocation6], 0
    %13 = vsyncpa [#allocation9], 0
    %14 = vsyncpa [#allocation4], 0
    %s15 = scalar_lea.sflag [#allocation4], 1
    %16 = vsyncpa %s15, 0
    loop: start=0, step=1, limit=4
    $region2: #{tpu_custom_call.1} parent=1 // loop_pre_header
      _
    $region3: #{tpu_custom_call.1} parent=1 // loop_header
      %s18 = sphi 0, %s22
      %p19 = scmp.ge.s32.totalorder %s18, 4
      %s28 = sphi 0, %s30
      %s31 = sphi 0, %s28
      %s32 = sphi 0, %s31
      %s48 = sphi 0, %s32
      %s52 = sphi 0, %s52
      %s54 = sphi 0, %s52
      %s55 = sphi 0, %s54
      %s69 = sphi 0, %s55
      %s73 = sphi 0, %s73
      %s75 = sphi 0, %s73
      %s76 = sphi 0, %s75
      %s90 = sphi 0, %s76
      %s94 = sphi 0, %s94
      %s96 = sphi 0, %s94
      %s97 = sphi 0, %s96
      %s111 = sphi 0, %s97
      %s117 = sphi 0, %s119
      %s120 = sphi 0, %s117
      %s121 = sphi 0, %s120
      %s137 = sphi 0, %s121
    $region4: #{tpu_custom_call.1} parent=1 // loop_header_branch
      %21 = sbr.rel (%p19) target = $region8
    $region5: #{tpu_custom_call.1} parent=1 // loop_body
      %s23 = ssub.s32 %s18, 1
      %s24 = ssub.s32 %s18, 2
      %s25 = sadd.s32 %s18, 1
      %s26 = ssub.s32 %s18, %s25
      %p27 = scmp.eq.s32.totalorder %s26, 0
      %s29 = sadd.s32 %s28, 1
      %s30 = scalar_select %p27, %s28, %s29
      %p33 = pneg %p27
      %p34 = scmp.eq.s32.totalorder %s18, 1
      %p35 = por %p33, %p34
      %p36 = scmp.ne.s32.totalorder %s28, %s31
      %p37 = scmp.eq.s32.totalorder %s18, 0
      %p38 = por %p36, %p37
      %p39 = scmp.ne.s32.totalorder %s28, %s31
      %p40 = scmp.eq.s32.totalorder %s23, 1
      %p41 = por %p39, %p40
      %p42 = scmp.ne.s32.totalorder %s31, %s32
      %p43 = scmp.eq.s32.totalorder %s23, 0
      %p44 = por %p42, %p43
      %p45 = scmp.ne.s32.totalorder %s31, %s32
      %p46 = scmp.eq.s32.totalorder %s24, 1
      %p47 = por %p45, %p46
      %p49 = scmp.ne.s32.totalorder %s32, %s48
      %p50 = scmp.eq.s32.totalorder %s24, 0
      %p51 = por %p49, %p50
      %s53 = sadd.s32 %s52, 1
      %p56 = scmp.eq.s32.totalorder %s18, 1
      %p57 = scmp.ne.s32.totalorder %s52, %s54
      %p58 = scmp.eq.s32.totalorder %s18, 0
      %p59 = por %p57, %p58
      %p60 = scmp.ne.s32.totalorder %s52, %s54
      %p61 = scmp.eq.s32.totalorder %s23, 1
      %p62 = por %p60, %p61
      %p63 = scmp.ne.s32.totalorder %s54, %s55
      %p64 = scmp.eq.s32.totalorder %s23, 0
      %p65 = por %p63, %p64
      %p66 = scmp.ne.s32.totalorder %s54, %s55
      %p67 = scmp.eq.s32.totalorder %s24, 1
      %p68 = por %p66, %p67
      %p70 = scmp.ne.s32.totalorder %s55, %s69
      %p71 = scmp.eq.s32.totalorder %s24, 0
      %p72 = por %p70, %p71
      %s74 = sadd.s32 %s73, 1
      %p77 = scmp.eq.s32.totalorder %s18, 1
      %p78 = scmp.ne.s32.totalorder %s73, %s75
      %p79 = scmp.eq.s32.totalorder %s18, 0
      %p80 = por %p78, %p79
      %p81 = scmp.ne.s32.totalorder %s73, %s75
      %p82 = scmp.eq.s32.totalorder %s23, 1
      %p83 = por %p81, %p82
      %p84 = scmp.ne.s32.totalorder %s75, %s76
      %p85 = scmp.eq.s32.totalorder %s23, 0
      %p86 = por %p84, %p85
      %p87 = scmp.ne.s32.totalorder %s75, %s76
      %p88 = scmp.eq.s32.totalorder %s24, 1
      %p89 = por %p87, %p88
      %p91 = scmp.ne.s32.totalorder %s76, %s90
      %p92 = scmp.eq.s32.totalorder %s24, 0
      %p93 = por %p91, %p92
      %s95 = sadd.s32 %s94, 1
      %p98 = scmp.eq.s32.totalorder %s18, 1
      %p99 = scmp.ne.s32.totalorder %s94, %s96
      %p100 = scmp.eq.s32.totalorder %s18, 0
      %p101 = por %p99, %p100
      %p102 = scmp.ne.s32.totalorder %s94, %s96
      %p103 = scmp.eq.s32.totalorder %s23, 1
      %p104 = por %p102, %p103
      %p105 = scmp.ne.s32.totalorder %s96, %s97
      %p106 = scmp.eq.s32.totalorder %s23, 0
      %p107 = por %p105, %p106
      %p108 = scmp.ne.s32.totalorder %s96, %s97
      %p109 = scmp.eq.s32.totalorder %s24, 1
      %p110 = por %p108, %p109
      %p112 = scmp.ne.s32.totalorder %s97, %s111
      %p113 = scmp.eq.s32.totalorder %s24, 0
      %p114 = por %p112, %p113
      %s115 = ssub.s32 %s18, %s25
      %p116 = scmp.eq.s32.totalorder %s115, 0
      %s118 = sadd.s32 %s117, 1
      %s119 = scalar_select %p116, %s117, %s118
      %p122 = pneg %p116
      %p123 = scmp.eq.s32.totalorder %s18, 1
      %p124 = por %p122, %p123
      %p125 = scmp.ne.s32.totalorder %s117, %s120
      %p126 = scmp.eq.s32.totalorder %s18, 0
      %p127 = por %p125, %p126
      %p128 = scmp.ne.s32.totalorder %s117, %s120
      %p129 = scmp.eq.s32.totalorder %s23, 1
      %p130 = por %p128, %p129
      %p131 = scmp.ne.s32.totalorder %s120, %s121
      %p132 = scmp.eq.s32.totalorder %s23, 0
      %p133 = por %p131, %p132
      %p134 = scmp.ne.s32.totalorder %s120, %s121
      %p135 = scmp.eq.s32.totalorder %s24, 1
      %p136 = por %p134, %p135
      %p138 = scmp.ne.s32.totalorder %s121, %s137
      %p139 = scmp.eq.s32.totalorder %s24, 0
      %p140 = por %p138, %p139
      %p141 = scmp.le.s32.totalorder 1, %s18
      %p142 = scmp.lt.s32.totalorder %s18, 3
      %p143 = pnand %p141, %p142
      %p144 = pneg %p143
      // Predicated region
      $region9: #{tpu_custom_call.1} parent=5 // pred_check
        _
      $region10: #{tpu_custom_call.1} parent=5 // pred_check_branch
        %146 = sbr.rel (%p143) target = $region12
      $region11: #{tpu_custom_call.1} parent=5 // pred_region
        %s147 = ssub.s32 %s18, 1
        // Predicated region
        $region13: #{tpu_custom_call.1} parent=11 // pred_check
          %p148 = pneg %p65
        $region14: #{tpu_custom_call.1} parent=11 // pred_check_branch
          %150 = sbr.rel (%p148) target = $region16
        $region15: #{tpu_custom_call.1} parent=11 // pred_region
          %s152 = ssub.s32 16, 16
          %153 = vsyncadd [#allocation6], %s152
          %s155 = sshll.u32 [#allocation5], 4
          %s156 = int_to_ptr.vmem [resolvable:$true] %s155
          %158 = dma.hbm_to_vmem [thread:$0]  %s1, 16, %s156, [#allocation6]
        $region16: #{tpu_custom_call.1} parent=11 // pred_fallthru
          _
        // Predicated region
        $region17: #{tpu_custom_call.1} parent=11 // pred_check
          %p159 = pneg %p86
        $region18: #{tpu_custom_call.1} parent=11 // pred_check_branch
          %161 = sbr.rel (%p159) target = $region20
        $region19: #{tpu_custom_call.1} parent=11 // pred_region
          %s163 = ssub.s32 16, 16
          %164 = vsyncadd [#allocation6], %s163
          %s166 = sshll.u32 [#allocation7], 4
          %s167 = int_to_ptr.vmem [resolvable:$true] %s166
          %169 = dma.hbm_to_vmem [thread:$0]  %s2, 16, %s167, [#allocation6]
        $region20: #{tpu_custom_call.1} parent=11 // pred_fallthru
          _
        // Predicated region
        $region21: #{tpu_custom_call.1} parent=11 // pred_check
          %p170 = pneg %p107
        $region22: #{tpu_custom_call.1} parent=11 // pred_check_branch
          %172 = sbr.rel (%p170) target = $region24
        $region23: #{tpu_custom_call.1} parent=11 // pred_region
          %s174 = ssub.s32 2048, 2048
          %175 = vsyncadd [#allocation9], %s174
          %s176 = sshll.u32 [#allocation8], 4
          %s177 = int_to_ptr.vmem [resolvable:$true] %s176
          %182 = dma.hbm_to_vmem [thread:$0]  %s3, 2048, %s177, [#allocation9], 128, 128, 8
        $region24: #{tpu_custom_call.1} parent=11 // pred_fallthru
          _
      $region12: #{tpu_custom_call.1} parent=5 // pred_fallthru
        _
      %p183 = scmp.lt.s32.totalorder %s18, 2
      // Predicated region
      $region25: #{tpu_custom_call.1} parent=5 // pred_check
        %p184 = pneg %p183
      $region26: #{tpu_custom_call.1} parent=5 // pred_check_branch
        %186 = sbr.rel (%p184) target = $region28
      $region27: #{tpu_custom_call.1} parent=5 // pred_region
        // Predicated region
        $region29: #{tpu_custom_call.1} parent=27 // pred_check
          %p187 = pneg %p38
        $region30: #{tpu_custom_call.1} parent=27 // pred_check_branch
          %189 = sbr.rel (%p187) target = $region32
        $region31: #{tpu_custom_call.1} parent=27 // pred_region
          %s190 = sand.u32 %s28, 1
          %s191 = scalar_lea.sflag [#allocation3], %s190
          %s192 = sand.u32 %s28, 1
          %s193 = smul.addr %s192, 64
          %s194 = scalar_lea.vmem [#allocation2], %s193
          %s195 = smul.u32 8, %s18
          %s197 = ssub.s32 1024, 1024
          %198 = vsyncadd %s191, %s197
          %s199 = smul.addr %s195, 128
          %s200 = scalar_lea.hbm %s0, %s199
          %s201 = sshll.u32 %s194, 4
          %s202 = int_to_ptr.vmem [resolvable:$true] %s201
          %207 = dma.hbm_to_vmem [thread:$0]  %s200, 1024, %s202, %s191, 128, 128, 8
        $region32: #{tpu_custom_call.1} parent=27 // pred_fallthru
          _
      $region28: #{tpu_custom_call.1} parent=5 // pred_fallthru
        _
      %p208 = scmp.le.s32.totalorder 1, %s18
      %p209 = scmp.lt.s32.totalorder %s18, 3
      %p210 = pnand %p208, %p209
      %p211 = pneg %p210
      // Predicated region
      $region33: #{tpu_custom_call.1} parent=5 // pred_check
        _
      $region34: #{tpu_custom_call.1} parent=5 // pred_check_branch
        %213 = sbr.rel (%p210) target = $region36
      $region35: #{tpu_custom_call.1} parent=5 // pred_region
        %s214 = ssub.s32 %s18, 1
        %s215 = sand.u32 %s31, 1
        %s216 = scalar_lea.sflag [#allocation3], %s215
        %s217 = sand.u32 %s31, 1
        %s218 = smul.addr %s217, 64
        %s219 = scalar_lea.vmem [#allocation2], %s218
        // Predicated region
        $region37: #{tpu_custom_call.1} parent=35 // pred_check
          %p220 = pneg %p44
        $region38: #{tpu_custom_call.1} parent=35 // pred_check_branch
          %222 = sbr.rel (%p220) target = $region40
        $region39: #{tpu_custom_call.1} parent=35 // pred_region
          %223 = dma.done %s216, 1024
        $region40: #{tpu_custom_call.1} parent=35 // pred_fallthru
          _
        // Predicated region
        $region41: #{tpu_custom_call.1} parent=35 // pred_check
          %p224 = pneg %p65
        $region42: #{tpu_custom_call.1} parent=35 // pred_check_branch
          %226 = sbr.rel (%p224) target = $region44
        $region43: #{tpu_custom_call.1} parent=35 // pred_region
          %227 = dma.done [#allocation6], 16
        $region44: #{tpu_custom_call.1} parent=35 // pred_fallthru
          _
        // Predicated region
        $region45: #{tpu_custom_call.1} parent=35 // pred_check
          %p228 = pneg %p86
        $region46: #{tpu_custom_call.1} parent=35 // pred_check_branch
          %230 = sbr.rel (%p228) target = $region48
        $region47: #{tpu_custom_call.1} parent=35 // pred_region
          %231 = dma.done [#allocation6], 16
        $region48: #{tpu_custom_call.1} parent=35 // pred_fallthru
          _
        // Predicated region
        $region49: #{tpu_custom_call.1} parent=35 // pred_check
          %p232 = pneg %p107
        $region50: #{tpu_custom_call.1} parent=35 // pred_check_branch
          %234 = sbr.rel (%p232) target = $region52
        $region51: #{tpu_custom_call.1} parent=35 // pred_region
          %235 = dma.done [#allocation9], 2048
        $region52: #{tpu_custom_call.1} parent=35 // pred_fallthru
          _
        %s236 = sand.u32 %s31, 1
        %s237 = scalar_lea.sflag [#allocation3], %s236
        %s238 = sand.u32 %s31, 1
        %s239 = smul.addr %s238, 64
        %s240 = scalar_lea.vmem [#allocation2], %s239
        %p241 = pneg %p44
        %p242 = pneg %p41
        %p243 = pneg %p65
        %p244 = pneg %p62
        %p245 = pneg %p86
        %p246 = pneg %p83
        %p247 = pneg %p107
        %p248 = pneg %p104
        %p249 = pneg %p133
        %p250 = pneg %p130
        %s251 = sand.u32 %s120, 1
        %s252 = scalar_lea.sflag [#allocation4], %s251
        %s253 = sand.u32 %s120, 1
        %s254 = smul.addr %s253, 64
        %s255 = scalar_lea.vmem [#allocation10], %s254
        %s256 = smul.u32 8, %s23
        %s257 = smul.u32 8, %s23
        %v258 = vld [vmem:[%s219] sm:$0xff]
        %v259 = vld [vmem:[%s219 + $0x8] sm:$0xff]
        %v260 = vld [vmem:[%s219 + $0x10] sm:$0xff]
        %v261 = vld [vmem:[%s219 + $0x18] sm:$0xff]
        %v262 = vld [vmem:[%s219 + $0x20] sm:$0xff]
        %v263 = vld [vmem:[%s219 + $0x28] sm:$0xff]
        %v264 = vld [vmem:[%s219 + $0x30] sm:$0xff]
        %v265 = vld [vmem:[%s219 + $0x38] sm:$0xff]
        %v266 = vld [vmem:[#allocation8] sm:$0xff]
        %v267 = vld [vmem:[#allocation8 + $0x8] sm:$0xff]
        %v268 = vld [vmem:[#allocation8 + $0x10] sm:$0xff]
        %v269 = vld [vmem:[#allocation8 + $0x18] sm:$0xff]
        %v270 = vld [vmem:[#allocation8 + $0x20] sm:$0xff]
        %v271 = vld [vmem:[#allocation8 + $0x28] sm:$0xff]
        %v272 = vld [vmem:[#allocation8 + $0x30] sm:$0xff]
        %v273 = vld [vmem:[#allocation8 + $0x38] sm:$0xff]
        %v274 = vld [vmem:[#allocation8 + $0x40] sm:$0xff]
        %v275 = vld [vmem:[#allocation8 + $0x48] sm:$0xff]
        %v276 = vld [vmem:[#allocation8 + $0x50] sm:$0xff]
        %v277 = vld [vmem:[#allocation8 + $0x58] sm:$0xff]
        %v278 = vld [vmem:[#allocation8 + $0x60] sm:$0xff]
        %v279 = vld [vmem:[#allocation8 + $0x68] sm:$0xff]
        %v280 = vld [vmem:[#allocation8 + $0x70] sm:$0xff]
        %v281 = vld [vmem:[#allocation8 + $0x78] sm:$0xff]
        %282 = vmatprep.subr.mxu0 0.0
        %283 = vmatpush1.msra.mxu0 %v266
        %284 = vmatprep.subr.mxu0 0.0
        %285 = vmatpush1.msra.mxu0 %v267
        %286 = vmatprep.subr.mxu0 0.0
        %287 = vmatpush1.msra.mxu0 %v268
        %288 = vmatprep.subr.mxu0 0.0
        %289 = vmatpush1.msra.mxu0 %v269
        %290 = vmatprep.subr.mxu0 0.0
        %291 = vmatpush1.msra.mxu0 %v270
        %292 = vmatprep.subr.mxu0 0.0
        %293 = vmatpush1.msra.mxu0 %v271
        %294 = vmatprep.subr.mxu0 0.0
        %295 = vmatpush1.msra.mxu0 %v272
        %296 = vmatprep.subr.mxu0 0.0
        %297 = vmatpush1.msra.mxu0 %v273
        %298 = vmatprep.subr.mxu0 0.0
        %299 = vmatpush1.msra.mxu0 %v274
        %300 = vmatprep.subr.mxu0 0.0
        %301 = vmatpush1.msra.mxu0 %v275
        %302 = vmatprep.subr.mxu0 0.0
        %303 = vmatpush1.msra.mxu0 %v276
        %304 = vmatprep.subr.mxu0 0.0
        %305 = vmatpush1.msra.mxu0 %v277
        %306 = vmatprep.subr.mxu0 0.0
        %307 = vmatpush1.msra.mxu0 %v278
        %308 = vmatprep.subr.mxu0 0.0
        %309 = vmatpush1.msra.mxu0 %v279
        %310 = vmatprep.subr.mxu0 0.0
        %311 = vmatpush1.msra.mxu0 %v280
        %312 = vmatprep.subr.mxu0 0.0
        %313 = vmatpush1.msra.mxu0 %v281
        %314 = vmatprep.subr.mxu0 0.0
        %315 = vmatpush1.msra.mxu0 0.0
        %316 = vmatprep.subr.mxu0 0.0
        %317 = vmatpush1.msra.mxu0 0.0
        %318 = vmatprep.subr.mxu0 0.0
        %319 = vmatpush1.msra.mxu0 0.0
        %320 = vmatprep.subr.mxu0 0.0
        %321 = vmatpush1.msra.mxu0 0.0
        %322 = vmatprep.subr.mxu0 0.0
        %323 = vmatpush1.msra.mxu0 0.0
        %324 = vmatprep.subr.mxu0 0.0
        %325 = vmatpush1.msra.mxu0 0.0
        %326 = vmatprep.subr.mxu0 0.0
        %327 = vmatpush1.msra.mxu0 0.0
        %328 = vmatprep.subr.mxu0 0.0
        %329 = vmatpush1.msra.mxu0 0.0
        %330 = vmatprep.subr.mxu0 0.0
        %331 = vmatpush1.msra.mxu0 0.0
        %332 = vmatprep.subr.mxu0 0.0
        %333 = vmatpush1.msra.mxu0 0.0
        %334 = vmatprep.subr.mxu0 0.0
        %335 = vmatpush1.msra.mxu0 0.0
        %336 = vmatprep.subr.mxu0 0.0
        %337 = vmatpush1.msra.mxu0 0.0
        %338 = vmatprep.subr.mxu0 0.0
        %339 = vmatpush1.msra.mxu0 0.0
        %340 = vmatprep.subr.mxu0 0.0
        %341 = vmatpush1.msra.mxu0 0.0
        %342 = vmatprep.subr.mxu0 0.0
        %343 = vmatpush1.msra.mxu0 0.0
        %344 = vmatprep.subr.mxu0 0.0
        %345 = vmatpush1.msra.mxu0 0.0
        %346 = vmatprep.mubr.f32.mxu0 0.0
        %347 = vmatmul.mubr.f32.gmra.mrb[0].mxu0 %v258
        %v348 = vpop.f32.mrb[0].mxu0
        %v349 = vadd.f32 0.0, %v348
        %v350 = vpop.f32.mrb[0].mxu0
        %351 = vmatprep.mubr.f32.mxu0 0.0
        %352 = vmatmul.mubr.f32.gmra.mrb[0].mxu0 %v259
        %v353 = vpop.f32.mrb[0].mxu0
        %v354 = vadd.f32 0.0, %v353
        %v355 = vpop.f32.mrb[0].mxu0
        %356 = vmatprep.mubr.f32.mxu0 0.0
        %357 = vmatmul.mubr.f32.gmra.mrb[0].mxu0 %v260
        %v358 = vpop.f32.mrb[0].mxu0
        %v359 = vadd.f32 0.0, %v358
        %v360 = vpop.f32.mrb[0].mxu0
        %361 = vmatprep.mubr.f32.mxu0 0.0
        %362 = vmatmul.mubr.f32.gmra.mrb[0].mxu0 %v261
        %v363 = vpop.f32.mrb[0].mxu0
        %v364 = vadd.f32 0.0, %v363
        %v365 = vpop.f32.mrb[0].mxu0
        %366 = vmatprep.mubr.f32.mxu0 0.0
        %367 = vmatmul.mubr.f32.gmra.mrb[0].mxu0 %v262
        %v368 = vpop.f32.mrb[0].mxu0
        %v369 = vadd.f32 0.0, %v368
        %v370 = vpop.f32.mrb[0].mxu0
        %371 = vmatprep.mubr.f32.mxu0 0.0
        %372 = vmatmul.mubr.f32.gmra.mrb[0].mxu0 %v263
        %v373 = vpop.f32.mrb[0].mxu0
        %v374 = vadd.f32 0.0, %v373
        %v375 = vpop.f32.mrb[0].mxu0
        %376 = vmatprep.mubr.f32.mxu0 0.0
        %377 = vmatmul.mubr.f32.gmra.mrb[0].mxu0 %v264
        %v378 = vpop.f32.mrb[0].mxu0
        %v379 = vadd.f32 0.0, %v378
        %v380 = vpop.f32.mrb[0].mxu0
        %381 = vmatprep.mubr.f32.mxu0 0.0
        %382 = vmatmul.mubr.f32.gmra.mrb[0].mxu0 %v265
        %v383 = vpop.f32.mrb[0].mxu0
        %v384 = vadd.f32 0.0, %v383
        %v385 = vpop.f32.mrb[0].mxu0
        %386 = vdwg.mxu0
        %v387 = vmul.f32 %v258, %v258
        %v388 = vmul.f32 %v259, %v259
        %v389 = vmul.f32 %v260, %v260
        %v390 = vmul.f32 %v261, %v261
        %v391 = vmul.f32 %v262, %v262
        %v392 = vmul.f32 %v263, %v263
        %v393 = vmul.f32 %v264, %v264
        %v394 = vmul.f32 %v265, %v265
        %395 = vmatprep.subr.mxu0 0.0
        %396 = vmatpush1.msra.mxu0 %v266
        %397 = vmatprep.subr.mxu0 0.0
        %398 = vmatpush1.msra.mxu0 %v267
        %399 = vmatprep.subr.mxu0 0.0
        %400 = vmatpush1.msra.mxu0 %v268
        %401 = vmatprep.subr.mxu0 0.0
        %402 = vmatpush1.msra.mxu0 %v269
        %403 = vmatprep.subr.mxu0 0.0
        %404 = vmatpush1.msra.mxu0 %v270
        %405 = vmatprep.subr.mxu0 0.0
        %406 = vmatpush1.msra.mxu0 %v271
        %407 = vmatprep.subr.mxu0 0.0
        %408 = vmatpush1.msra.mxu0 %v272
        %409 = vmatprep.subr.mxu0 0.0
        %410 = vmatpush1.msra.mxu0 %v273
        %411 = vmatprep.subr.mxu0 0.0
        %412 = vmatpush1.msra.mxu0 %v274
        %413 = vmatprep.subr.mxu0 0.0
        %414 = vmatpush1.msra.mxu0 %v275
        %415 = vmatprep.subr.mxu0 0.0
        %416 = vmatpush1.msra.mxu0 %v276
        %417 = vmatprep.subr.mxu0 0.0
        %418 = vmatpush1.msra.mxu0 %v277
        %419 = vmatprep.subr.mxu0 0.0
        %420 = vmatpush1.msra.mxu0 %v278
        %421 = vmatprep.subr.mxu0 0.0
        %422 = vmatpush1.msra.mxu0 %v279
        %423 = vmatprep.subr.mxu0 0.0
        %424 = vmatpush1.msra.mxu0 %v280
        %425 = vmatprep.subr.mxu0 0.0
        %426 = vmatpush1.msra.mxu0 %v281
        %427 = vmatprep.subr.mxu0 0.0
        %428 = vmatpush1.msra.mxu0 0.0
        %429 = vmatprep.subr.mxu0 0.0
        %430 = vmatpush1.msra.mxu0 0.0
        %431 = vmatprep.subr.mxu0 0.0
        %432 = vmatpush1.msra.mxu0 0.0
        %433 = vmatprep.subr.mxu0 0.0
        %434 = vmatpush1.msra.mxu0 0.0
        %435 = vmatprep.subr.mxu0 0.0
        %436 = vmatpush1.msra.mxu0 0.0
        %437 = vmatprep.subr.mxu0 0.0
        %438 = vmatpush1.msra.mxu0 0.0
        %439 = vmatprep.subr.mxu0 0.0
        %440 = vmatpush1.msra.mxu0 0.0
        %441 = vmatprep.subr.mxu0 0.0
        %442 = vmatpush1.msra.mxu0 0.0
        %443 = vmatprep.subr.mxu0 0.0
        %444 = vmatpush1.msra.mxu0 0.0
        %445 = vmatprep.subr.mxu0 0.0
        %446 = vmatpush1.msra.mxu0 0.0
        %447 = vmatprep.subr.mxu0 0.0
        %448 = vmatpush1.msra.mxu0 0.0
        %449 = vmatprep.subr.mxu0 0.0
        %450 = vmatpush1.msra.mxu0 0.0
        %451 = vmatprep.subr.mxu0 0.0
        %452 = vmatpush1.msra.mxu0 0.0
        %453 = vmatprep.subr.mxu0 0.0
        %454 = vmatpush1.msra.mxu0 0.0
        %455 = vmatprep.subr.mxu0 0.0
        %456 = vmatpush1.msra.mxu0 0.0
        %457 = vmatprep.subr.mxu0 0.0
        %458 = vmatpush1.msra.mxu0 0.0
        %459 = vmatprep.mubr.f32.mxu0 0.0
        %460 = vmatmul.mubr.f32.gmra.mrb[0].mxu0 %v387
        %v461 = vpop.f32.mrb[0].mxu0
        %v462 = vadd.f32 0.0, %v461
        %v463 = vpop.f32.mrb[0].mxu0
        %464 = vmatprep.mubr.f32.mxu0 0.0
        %465 = vmatmul.mubr.f32.gmra.mrb[0].mxu0 %v388
        %v466 = vpop.f32.mrb[0].mxu0
        %v467 = vadd.f32 0.0, %v466
        %v468 = vpop.f32.mrb[0].mxu0
        %469 = vmatprep.mubr.f32.mxu0 0.0
        %470 = vmatmul.mubr.f32.gmra.mrb[0].mxu0 %v389
        %v471 = vpop.f32.mrb[0].mxu0
        %v472 = vadd.f32 0.0, %v471
        %v473 = vpop.f32.mrb[0].mxu0
        %474 = vmatprep.mubr.f32.mxu0 0.0
        %475 = vmatmul.mubr.f32.gmra.mrb[0].mxu0 %v390
        %v476 = vpop.f32.mrb[0].mxu0
        %v477 = vadd.f32 0.0, %v476
        %v478 = vpop.f32.mrb[0].mxu0
        %479 = vmatprep.mubr.f32.mxu0 0.0
        %480 = vmatmul.mubr.f32.gmra.mrb[0].mxu0 %v391
        %v481 = vpop.f32.mrb[0].mxu0
        %v482 = vadd.f32 0.0, %v481
        %v483 = vpop.f32.mrb[0].mxu0
        %484 = vmatprep.mubr.f32.mxu0 0.0
        %485 = vmatmul.mubr.f32.gmra.mrb[0].mxu0 %v392
        %v486 = vpop.f32.mrb[0].mxu0
        %v487 = vadd.f32 0.0, %v486
        %v488 = vpop.f32.mrb[0].mxu0
        %489 = vmatprep.mubr.f32.mxu0 0.0
        %490 = vmatmul.mubr.f32.gmra.mrb[0].mxu0 %v393
        %v491 = vpop.f32.mrb[0].mxu0
        %v492 = vadd.f32 0.0, %v491
        %v493 = vpop.f32.mrb[0].mxu0
        %494 = vmatprep.mubr.f32.mxu0 0.0
        %495 = vmatmul.mubr.f32.gmra.mrb[0].mxu0 %v394
        %v496 = vpop.f32.mrb[0].mxu0
        %v497 = vadd.f32 0.0, %v496
        %v498 = vpop.f32.mrb[0].mxu0
        %499 = vdwg.mxu0
        %v500 = vmul.f32 %v349, 0.03125
        %v501 = vmul.f32 %v354, 0.03125
        %v502 = vmul.f32 %v359, 0.03125
        %v503 = vmul.f32 %v364, 0.03125
        %v504 = vmul.f32 %v369, 0.03125
        %v505 = vmul.f32 %v374, 0.03125
        %v506 = vmul.f32 %v379, 0.03125
        %v507 = vmul.f32 %v384, 0.03125
        %v508 = vmul.f32 %v462, 0.03125
        %v509 = vmul.f32 %v467, 0.03125
        %v510 = vmul.f32 %v472, 0.03125
        %v511 = vmul.f32 %v477, 0.03125
        %v512 = vmul.f32 %v482, 0.03125
        %v513 = vmul.f32 %v487, 0.03125
        %v514 = vmul.f32 %v492, 0.03125
        %v515 = vmul.f32 %v497, 0.03125
        %v516 = vmul.f32 %v500, %v500
        %v517 = vmul.f32 %v501, %v501
        %v518 = vmul.f32 %v502, %v502
        %v519 = vmul.f32 %v503, %v503
        %v520 = vmul.f32 %v504, %v504
        %v521 = vmul.f32 %v505, %v505
        %v522 = vmul.f32 %v506, %v506
        %v523 = vmul.f32 %v507, %v507
        %v524 = vsub.f32 %v508, %v516
        %v525 = vsub.f32 %v509, %v517
        %v526 = vsub.f32 %v510, %v518
        %v527 = vsub.f32 %v511, %v519
        %v528 = vsub.f32 %v512, %v520
        %v529 = vsub.f32 %v513, %v521
        %v530 = vsub.f32 %v514, %v522
        %v531 = vsub.f32 %v515, %v523
        %v532 = vmax.f32 %v524, 0.0
        %v533 = vmax.f32 %v525, 0.0
        %v534 = vmax.f32 %v526, 0.0
        %v535 = vmax.f32 %v527, 0.0
        %v536 = vmax.f32 %v528, 0.0
        %v537 = vmax.f32 %v529, 0.0
        %v538 = vmax.f32 %v530, 0.0
        %v539 = vmax.f32 %v531, 0.0
        %v540 = vadd.f32 %v532, 1e-05
        %v541 = vadd.f32 %v533, 1e-05
        %v542 = vadd.f32 %v534, 1e-05
        %v543 = vadd.f32 %v535, 1e-05
        %v544 = vadd.f32 %v536, 1e-05
        %v545 = vadd.f32 %v537, 1e-05
        %v546 = vadd.f32 %v538, 1e-05
        %v547 = vadd.f32 %v539, 1e-05
        %v548 = vrsqrt.pop %v540
        %v549 = vrsqrt.pop %v541
        %v550 = vrsqrt.pop %v542
        %v551 = vrsqrt.pop %v543
        %v552 = vrsqrt.pop %v544
        %v553 = vrsqrt.pop %v545
        %v554 = vrsqrt.pop %v546
        %v555 = vrsqrt.pop %v547
        %v556 = vsub.f32 %v258, %v500
        %v557 = vsub.f32 %v259, %v501
        %v558 = vsub.f32 %v260, %v502
        %v559 = vsub.f32 %v261, %v503
        %v560 = vsub.f32 %v262, %v504
        %v561 = vsub.f32 %v263, %v505
        %v562 = vsub.f32 %v264, %v506
        %v563 = vsub.f32 %v265, %v507
        %v564 = vld [vmem:[#allocation5] sm:$0x1]
        %v566 = vlaneseq
        %v567 = vshrl.u32 %v566, 7
        %v568 = vsub.s32 0, %v567
        %v569 = vrot.slane %v564, %v568
        %v571 = vmul.f32 %v548, %v569
        %v572 = vmul.f32 %v549, %v569
        %v573 = vmul.f32 %v550, %v569
        %v574 = vmul.f32 %v551, %v569
        %v575 = vmul.f32 %v552, %v569
        %v576 = vmul.f32 %v553, %v569
        %v577 = vmul.f32 %v554, %v569
        %v578 = vmul.f32 %v555, %v569
        %v579 = vmul.f32 %v556, %v571
        %v580 = vmul.f32 %v557, %v572
        %v581 = vmul.f32 %v558, %v573
        %v582 = vmul.f32 %v559, %v574
        %v583 = vmul.f32 %v560, %v575
        %v584 = vmul.f32 %v561, %v576
        %v585 = vmul.f32 %v562, %v577
        %v586 = vmul.f32 %v563, %v578
        %v587 = vld [vmem:[#allocation7] sm:$0x1]
        %v589 = vlaneseq
        %v590 = vshrl.u32 %v589, 7
        %v591 = vsub.s32 0, %v590
        %v592 = vrot.slane %v587, %v591
        %v594 = vadd.f32 %v579, %v592
        %v595 = vadd.f32 %v580, %v592
        %v596 = vadd.f32 %v581, %v592
        %v597 = vadd.f32 %v582, %v592
        %v598 = vadd.f32 %v583, %v592
        %v599 = vadd.f32 %v584, %v592
        %v600 = vadd.f32 %v585, %v592
        %v601 = vadd.f32 %v586, %v592
        %602 = vst [vmem:[%s255] sm:$0xff] %v594
        %603 = vst [vmem:[%s255 + $0x8] sm:$0xff] %v595
        %604 = vst [vmem:[%s255 + $0x10] sm:$0xff] %v596
        %605 = vst [vmem:[%s255 + $0x18] sm:$0xff] %v597
        %606 = vst [vmem:[%s255 + $0x20] sm:$0xff] %v598
        %607 = vst [vmem:[%s255 + $0x28] sm:$0xff] %v599
        %608 = vst [vmem:[%s255 + $0x30] sm:$0xff] %v600
        %609 = vst [vmem:[%s255 + $0x38] sm:$0xff] %v601
        %s610 = sand.u32 %s120, 1
        %s611 = scalar_lea.sflag [#allocation4], %s610
        %s612 = sand.u32 %s120, 1
        %s613 = smul.addr %s612, 64
        %s614 = scalar_lea.vmem [#allocation10], %s613
        // Predicated region
        $region53: #{tpu_custom_call.1} parent=35 // pred_check
          %p615 = pneg %p130
        $region54: #{tpu_custom_call.1} parent=35 // pred_check_branch
          %617 = sbr.rel (%p615) target = $region56
        $region55: #{tpu_custom_call.1} parent=35 // pred_region
          %s618 = smul.u32 8, %s23
          %s620 = ssub.s32 1024, 1024
          %621 = vsyncadd %s611, %s620
          %s622 = smul.addr %s618, 128
          %s623 = scalar_lea.hbm %s4, %s622
          %s624 = sshll.u32 %s614, 4
          %s625 = int_to_ptr.vmem [resolvable:$true] %s624
          %630 = dma.vmem_to_hbm [thread:$0]  %s625, 1024, %s623, %s611, 128, 128, 8
        $region56: #{tpu_custom_call.1} parent=35 // pred_fallthru
          _
      $region36: #{tpu_custom_call.1} parent=5 // pred_fallthru
        _
      %p631 = scmp.le.s32.totalorder 2, %s18
      // Predicated region
      $region57: #{tpu_custom_call.1} parent=5 // pred_check
        %p632 = pneg %p631
      $region58: #{tpu_custom_call.1} parent=5 // pred_check_branch
        %634 = sbr.rel (%p632) target = $region60
      $region59: #{tpu_custom_call.1} parent=5 // pred_region
        %s635 = ssub.s32 %s18, 2
        // Predicated region
        $region61: #{tpu_custom_call.1} parent=59 // pred_check
          %p636 = pneg %p136
        $region62: #{tpu_custom_call.1} parent=59 // pred_check_branch
          %638 = sbr.rel (%p636) target = $region64
        $region63: #{tpu_custom_call.1} parent=59 // pred_region
          %s639 = sand.u32 %s121, 1
          %s640 = scalar_lea.sflag [#allocation4], %s639
          %s641 = sand.u32 %s121, 1
          %s642 = smul.addr %s641, 64
          %s643 = scalar_lea.vmem [#allocation10], %s642
          %644 = dma.done %s640, 1024
        $region64: #{tpu_custom_call.1} parent=59 // pred_fallthru
          _
      $region60: #{tpu_custom_call.1} parent=5 // pred_fallthru
        _
    $region6: #{tpu_custom_call.1} parent=1 // loop_footer
      %s22 = sadd.s32 1, %s18
    $region7: #{tpu_custom_call.1} parent=1 // loop_footer_branch
      %17 = sbr.rel target = $region3
    $region8: #{tpu_custom_call.1} parent=1 // loop_exit
      _
    %645 = vsyncpa [#allocation3], 1
    %s646 = scalar_lea.sflag [#allocation3], 1
    %647 = vsyncpa %s646, 1
    %648 = vsyncpa [#allocation6], 1
    %649 = vsyncpa [#allocation9], 1
    %650 = vsyncpa [#allocation4], 1
    %s651 = scalar_lea.sflag [#allocation4], 1
    %652 = vsyncpa %s651, 1

</llo_original>
